<compile_context>
chip_gen: v6e
topology: v6e:2x2x1
jax: 0.10.0
libtpu: 0.0.40
codegen_flags: <defaults>
</compile_context>

<pallas_src>
import functools

import jax
import jax.numpy as jnp
from jax.experimental import pallas as pl
from jax.experimental.pallas import tpu as pltpu

_LANES = 128
_MAX_BLOCK_ROWS = 1024  # 1024 x 128 x 4 B = 512 KiB per pair-input block


def _loss_kernel(p_ref, wn_ref, sel_ref, mu_ref, ls_ref, out_ref, acc_ref,
                 *, kl_scale, kl_bias):
    step = pl.program_id(0)

    @pl.when(step == 0)
    def _():
        # Constant '+1' term of the KL (already scaled & sign-folded).
        acc_ref[0] = jnp.float32(kl_bias)

    p = p_ref[...].astype(jnp.float32)
    wn = wn_ref[...]
    sel = sel_ref[...]

    # Labels are binary (adjacency), so select the relevant probability once
    # and take a single log.  torch.nn.functional.binary_cross_entropy clamps
    # each log term at -100.
    t = jnp.where(sel != 0.0, p, 1.0 - p)
    bce_elem = wn * jnp.maximum(jnp.log(t), -100.0)   # wn = -bce_norm * w / N^2
    acc_ref[0] += jnp.sum(bce_elem)

    @pl.when(step == pl.num_programs(0) - 1)
    def _():
        mu = mu_ref[...].astype(jnp.float32)
        ls = ls_ref[...].astype(jnp.float32)
        # KL element without the constant '+1' (folded into kl_bias); sign and
        # all scaling folded into kl_scale.
        kl_elem = 2.0 * ls - mu * mu - jnp.exp(2.0 * ls)
        out_ref[0, 0] = acc_ref[0] + jnp.float32(kl_scale) * jnp.sum(kl_elem)


def make_loss_fn(adjacency: jnp.ndarray, latent_dim: int):
    """Builds the Loss.forward equivalent from a dense (N, N) 0/1 adjacency."""
    n = int(adjacency.shape[0])
    num_pairs = n * n
    # edges of the graph with self loops removed
    off_diag = adjacency * (1.0 - jnp.eye(n, dtype=adjacency.dtype))
    num_edges = int(jnp.sum(off_diag))
    assert 0 < num_edges < num_pairs

    # lane-dense packing: flattened sizes must tile into 128 lanes
    # TODO(synk): for N*N or N*D not multiples of 128, pad and mask the tail
    # (zero weight plus a safe pad value, as done for the row-block padding).
    assert num_pairs % _LANES == 0, "N*N must be a multiple of 128"
    assert (n * latent_dim) % _LANES == 0, "N*D must be a multiple of 128"
    pr = num_pairs // _LANES          # rows holding the N*N pair grid
    lr = (n * latent_dim) // _LANES   # rows holding each N*D latent array

    # Row tiling of the pair grid: one block if small, else 1024-row blocks
    # (multiple of 8 sublanes) so large graphs pipeline and fit VMEM.
    if pr <= _MAX_BLOCK_ROWS:
        block_rows, pr_pad = pr, pr
    else:
        block_rows = _MAX_BLOCK_ROWS
        pr_pad = ((pr + block_rows - 1) // block_rows) * block_rows
    num_blocks = pr_pad // block_rows

    bce_norm = num_pairs / ((num_pairs - num_edges) * 2.0)
    kl_norm = 1.0 / n
    pos_scale = (num_pairs - num_edges) / num_edges

    # weight = ones; positions where adjacency (incl. self loops) == 1 scaled.
    labels_flat = adjacency.reshape(-1).astype(jnp.float32)
    w = jnp.where(labels_flat == 1.0, pos_scale, 1.0).astype(jnp.float32)
    # fold -1 (BCE sign), bce_norm and the 1/num_pairs 'mean' into the weight
    wn = ((-bce_norm / num_pairs) * w).reshape(pr, _LANES).astype(jnp.float32)
    sel = labels_flat.reshape(pr, _LANES)
    if pr_pad > pr:
        pad = ((0, pr_pad - pr), (0, 0))
        wn = jnp.pad(wn, pad)    # zero weight -> padded rows contribute 0
        sel = jnp.pad(sel, pad)

    # fold kl_norm * 0.5, the mean over nodes, and the loss sign into scalars
    kl_scale = -(kl_norm * 0.5 / n)
    kl_bias = kl_scale * n * latent_dim

    kernel = functools.partial(_loss_kernel, kl_scale=kl_scale, kl_bias=kl_bias)

    pair_spec = pl.BlockSpec((block_rows, _LANES), lambda i: (i, 0))
    latent_spec = pl.BlockSpec((lr, _LANES), lambda i: (0, 0))  # fetched once

    call = pl.pallas_call(
        kernel,
        grid=(num_blocks,),
        out_shape=jax.ShapeDtypeStruct((1, 1), jnp.float32),
        in_specs=[pair_spec, pair_spec, pair_spec, latent_spec, latent_spec],
        out_specs=pl.BlockSpec((1, 1), lambda i: (0, 0),
                               memory_space=pltpu.SMEM),
        scratch_shapes=[pltpu.SMEM((1,), jnp.float32)],
        compiler_params=pltpu.CompilerParams(
            dimension_semantics=("arbitrary",)),
    )

    # TODO(synk): at N=16 the pallas_call dispatch dominates; to amortize it,
    # batch B graphs/steps per call (leading "parallel" grid axis, per-graph
    # partials -> also uses v7x's 2nd TensorCore) or fuse this loss into the
    # decoder's epilogue.  Single-graph forward kept to match the module API.
    @jax.jit
    def loss_fn(predictions, labels, mu, log_sigma):
        # `labels` must equal the build-time adjacency (weights/select are
        # baked from it, matching the torch module's usage).
        del labels
        p2d = predictions.reshape(pr, _LANES)
        if pr_pad > pr:
            # pad value 0.5 keeps log() finite; wn == 0 there so it adds 0
            p2d = jnp.pad(p2d, ((0, pr_pad - pr), (0, 0)), constant_values=0.5)
        mu2d = mu.reshape(lr, _LANES)
        ls2d = log_sigma.reshape(lr, _LANES)
        return call(p2d, wn, sel, mu2d, ls2d)[0, 0]

    return loss_fn


if __name__ == "__main__":
    N = 16       # num_nodes
    D = 8        # latent dim of mu / log_sigma

    key = jax.random.PRNGKey(0)
    k_adj, k_pred, k_mu, k_ls = jax.random.split(key, 4)

    # deterministic synthetic train graph (dense 0/1 adjacency, incl. possible self loops)
    adjacency = (jax.random.uniform(k_adj, (N, N)) < 0.2).astype(jnp.float32)
    adjacency = adjacency.at[0, 1].set(1.0)   # ensure >= 1 off-diagonal edge

    predictions = jax.nn.sigmoid(jax.random.normal(k_pred, (N * N,))).astype(jnp.float32)
    labels = adjacency.reshape(-1)
    mu = jax.random.normal(k_mu, (N, D), dtype=jnp.float32)
    log_sigma = 0.1 * jax.random.normal(k_ls, (N, D), dtype=jnp.float32)

    loss_fn = make_loss_fn(adjacency, D)
    loss = loss_fn(predictions, labels, mu, log_sigma)
    jax.block_until_ready(loss)

    # pure-JAX reference check (mirrors the torch module)
    n2 = N * N
    off_diag = adjacency * (1.0 - jnp.eye(N))
    E = float(jnp.sum(off_diag))
    bce_norm = n2 / ((n2 - E) * 2.0)
    kl_norm = 1.0 / N
    w = jnp.where(labels == 1, (n2 - E) / E, 1.0)
    logp = jnp.maximum(jnp.log(predictions), -100.0)
    log1mp = jnp.maximum(jnp.log(1.0 - predictions), -100.0)
    bce_ref = bce_norm * jnp.mean(
        w * -(labels * logp + (1.0 - labels) * log1mp))
    kl_ref = kl_norm * 0.5 * jnp.mean(
        jnp.sum(1.0 + 2.0 * log_sigma - mu ** 2 - jnp.exp(log_sigma) ** 2, axis=1))
    ref = bce_ref - kl_ref
    assert jnp.allclose(loss, ref, rtol=1e-5, atol=1e-5), (loss, ref)

    print("KERNEL_OK")
</pallas_src>

<mosaic_0001>
module attributes {stable_mosaic.version = 11 : i64} {
  func.func @_loss_kernel(%arg0: i32, %arg1: memref<2x128xf32, #tpu.memory_space<vmem>>, %arg2: memref<2x128xf32, #tpu.memory_space<vmem>>, %arg3: memref<2x128xf32, #tpu.memory_space<vmem>>, %arg4: memref<1x128xf32, #tpu.memory_space<vmem>>, %arg5: memref<1x128xf32, #tpu.memory_space<vmem>>, %arg6: memref<1x1xf32, #tpu.memory_space<smem>>, %arg7: memref<1xf32, #tpu.memory_space<smem>>) attributes {dimension_semantics = [#tpu.dimension_semantics<arbitrary>], iteration_bounds = array<i64: 1>, scalar_prefetch = 0 : i64, scratch_operands = 1 : i64, tpu.core_type = #tpu.core_type<tc>, window_params = [{transform_indices = @transform_0, window_bounds = array<i64: 2, 128>}, {transform_indices = @transform_1, window_bounds = array<i64: 2, 128>}, {transform_indices = @transform_2, window_bounds = array<i64: 2, 128>}, {pipeline_mode = #tpu.pipeline_mode<synchronous>, transform_indices = @transform_3, window_bounds = array<i64: 1, 128>}, {pipeline_mode = #tpu.pipeline_mode<synchronous>, transform_indices = @transform_4, window_bounds = array<i64: 1, 128>}, {transform_indices = @transform_5, window_bounds = array<i64: 1, 1>}]} {
    %c0_i32 = arith.constant 0 : i32
    %0 = arith.cmpi eq, %arg0, %c0_i32 : i32
    %1 = arith.extui %0 : i1 to i32
    %c0_i32_0 = arith.constant 0 : i32
    %2 = arith.cmpi ne, %1, %c0_i32_0 : i32
    scf.if %2 {
      %cst_13 = arith.constant -2.500000e-01 : f32
      %c0_14 = arith.constant 0 : index
      %25 = memref.load %arg7[%c0_14] : memref<1xf32, #tpu.memory_space<smem>>
      memref.store %cst_13, %arg7[%c0_14] : memref<1xf32, #tpu.memory_space<smem>>
    } else {
    }
    %c0 = arith.constant 0 : index
    %c0_1 = arith.constant 0 : index
    %3 = vector.load %arg1[%c0, %c0_1] : memref<2x128xf32, #tpu.memory_space<vmem>>, vector<2x128xf32>
    %c0_2 = arith.constant 0 : index
    %c0_3 = arith.constant 0 : index
    %4 = vector.load %arg2[%c0_2, %c0_3] : memref<2x128xf32, #tpu.memory_space<vmem>>, vector<2x128xf32>
    %c0_4 = arith.constant 0 : index
    %c0_5 = arith.constant 0 : index
    %5 = vector.load %arg3[%c0_4, %c0_5] : memref<2x128xf32, #tpu.memory_space<vmem>>, vector<2x128xf32>
    %cst = arith.constant 0.000000e+00 : f32
    %6 = vector.broadcast %cst : f32 to vector<2x128xf32>
    %7 = arith.cmpf one, %5, %6 : vector<2x128xf32>
    %cst_6 = arith.constant 1.000000e+00 : f32
    %8 = vector.broadcast %cst_6 : f32 to vector<2x128xf32>
    %9 = arith.subf %8, %3 : vector<2x128xf32>
    %10 = arith.select %7, %3, %9 : vector<2x128xi1>, vector<2x128xf32>
    %11 = math.log %10 : vector<2x128xf32>
    %cst_7 = arith.constant -1.000000e+02 : f32
    %12 = vector.broadcast %cst_7 : f32 to vector<2x128xf32>
    %13 = arith.maximumf %11, %12 : vector<2x128xf32>
    %14 = arith.mulf %4, %13 : vector<2x128xf32>
    %c0_8 = arith.constant 0 : index
    %15 = memref.load %arg7[%c0_8] : memref<1xf32, #tpu.memory_space<smem>>
    %16 = vector.shape_cast %14 : vector<2x128xf32> to vector<1x2x128xf32>
    %cst_9 = arith.constant dense<0.000000e+00> : vector<1xf32>
    %17 = vector.multi_reduction <add>, %16, %cst_9 [1, 2] : vector<1x2x128xf32> to vector<1xf32>
    %18 = vector.shape_cast %17 : vector<1xf32> to vector<1x1x1xf32>
    %19 = vector.extract %18[0, 0, 0] : f32 from vector<1x1x1xf32>
    %20 = arith.addf %15, %19 : f32
    %c0_10 = arith.constant 0 : index
    %21 = memref.load %arg7[%c0_10] : memref<1xf32, #tpu.memory_space<smem>>
    memref.store %20, %arg7[%c0_10] : memref<1xf32, #tpu.memory_space<smem>>
    %c0_i32_11 = arith.constant 0 : i32
    %22 = arith.cmpi eq, %arg0, %c0_i32_11 : i32
    %23 = arith.extui %22 : i1 to i32
    %c0_i32_12 = arith.constant 0 : i32
    %24 = arith.cmpi ne, %23, %c0_i32_12 : i32
    scf.if %24 {
      %c0_13 = arith.constant 0 : index
      %c0_14 = arith.constant 0 : index
      %25 = vector.load %arg4[%c0_13, %c0_14] : memref<1x128xf32, #tpu.memory_space<vmem>>, vector<1x128xf32>
      %c0_15 = arith.constant 0 : index
      %c0_16 = arith.constant 0 : index
      %26 = vector.load %arg5[%c0_15, %c0_16] : memref<1x128xf32, #tpu.memory_space<vmem>>, vector<1x128xf32>
      %cst_17 = arith.constant 2.000000e+00 : f32
      %27 = vector.broadcast %cst_17 : f32 to vector<1x128xf32>
      %28 = arith.mulf %27, %26 : vector<1x128xf32>
      %29 = arith.mulf %25, %25 : vector<1x128xf32>
      %30 = arith.subf %28, %29 : vector<1x128xf32>
      %cst_18 = arith.constant 2.000000e+00 : f32
      %31 = vector.broadcast %cst_18 : f32 to vector<1x128xf32>
      %32 = arith.mulf %31, %26 : vector<1x128xf32>
      %33 = math.exp %32 : vector<1x128xf32>
      %34 = arith.subf %30, %33 : vector<1x128xf32>
      %c0_19 = arith.constant 0 : index
      %35 = memref.load %arg7[%c0_19] : memref<1xf32, #tpu.memory_space<smem>>
      %36 = vector.shape_cast %34 : vector<1x128xf32> to vector<1x1x128xf32>
      %cst_20 = arith.constant dense<0.000000e+00> : vector<1xf32>
      %37 = vector.multi_reduction <add>, %36, %cst_20 [1, 2] : vector<1x1x128xf32> to vector<1xf32>
      %38 = vector.shape_cast %37 : vector<1xf32> to vector<1x1x1xf32>
      %39 = vector.extract %38[0, 0, 0] : f32 from vector<1x1x1xf32>
      %cst_21 = arith.constant -0.001953125 : f32
      %40 = arith.mulf %cst_21, %39 : f32
      %41 = arith.addf %35, %40 : f32
      %c0_22 = arith.constant 0 : index
      %c0_23 = arith.constant 0 : index
      %42 = memref.load %arg6[%c0_22, %c0_23] : memref<1x1xf32, #tpu.memory_space<smem>>
      memref.store %41, %arg6[%c0_22, %c0_23] : memref<1x1xf32, #tpu.memory_space<smem>>
    } else {
    }
    return
  }
  func.func @transform_0(%arg0: i32) -> (i32, i32) {
    %c0_i32 = arith.constant 0 : i32
    %c0_i32_0 = arith.constant 0 : i32
    return %arg0, %c0_i32 : i32, i32
  }
  func.func @transform_1(%arg0: i32) -> (i32, i32) {
    %c0_i32 = arith.constant 0 : i32
    %c0_i32_0 = arith.constant 0 : i32
    return %arg0, %c0_i32 : i32, i32
  }
  func.func @transform_2(%arg0: i32) -> (i32, i32) {
    %c0_i32 = arith.constant 0 : i32
    %c0_i32_0 = arith.constant 0 : i32
    return %arg0, %c0_i32 : i32, i32
  }
  func.func @transform_3(%arg0: i32) -> (i32, i32) {
    %c0_i32 = arith.constant 0 : i32
    %c0_i32_0 = arith.constant 0 : i32
    %c0_i32_1 = arith.constant 0 : i32
    return %c0_i32, %c0_i32_0 : i32, i32
  }
  func.func @transform_4(%arg0: i32) -> (i32, i32) {
    %c0_i32 = arith.constant 0 : i32
    %c0_i32_0 = arith.constant 0 : i32
    %c0_i32_1 = arith.constant 0 : i32
    return %c0_i32, %c0_i32_0 : i32, i32
  }
  func.func @transform_5(%arg0: i32) -> (i32, i32) {
    %c0_i32 = arith.constant 0 : i32
    %c0_i32_0 = arith.constant 0 : i32
    %c0_i32_1 = arith.constant 0 : i32
    return %c0_i32, %c0_i32_0 : i32, i32
  }
}

</mosaic_0001>

<llo_original>
// kernel: loss_fn.1
$region0: #{loss_fn.1}
  #allocation0 [shape = 'u32[]', space=smem, size = 0x4, offset = 0x4, fixed_abs, tag = 'smem constant byte address 0x4 - core index']
  #allocation1 [shape = 'u32[144,128]{1,0:T(1,128)}', space=vmem, size = 0x12000, scoped, tag = 'internal scratch']
  #allocation2 [shape = 'f32[1]{0:T(128)}', space=smem, size = 0x200, scoped, tag = 'scratch operand']
  %s0 = inlined_call_operand.vmem [shape: f32[2,128], index: 0, kind: input, shape index: {}]
  %s1 = inlined_call_operand.vmem [shape: f32[2,128], index: 1, kind: input, shape index: {}]
  %s2 = inlined_call_operand.vmem [shape: f32[2,128], index: 2, kind: input, shape index: {}]
  %s3 = inlined_call_operand.vmem [shape: f32[1,128], index: 3, kind: input, shape index: {}]
  %s4 = inlined_call_operand.vmem [shape: f32[1,128], index: 4, kind: input, shape index: {}]
  %s5 = inlined_call_operand.hbm [shape: f32[1,1], index: 5, kind: output, shape index: {}]
  %s6 = sld [smem:[#allocation0]]
  $region38: #{loss_fn.1} parent=0
    _
  %s8 = ssub.s32 1, %s6
  %s9 = scalar_select 0, %s8, %s6
  $region1: #{loss_fn.1} parent=0
    #allocation3 [shape = 'u8[512]{0}', space=smem, size = 0x200, scoped, tag = 'output window, operand 0, single buffered']
    #allocation4 [shape = 's32[1]{0}', space=sflag, size = 0x4, scoped, tag = 'scoped memory for loss_fn.1']
    %10 = vsyncpa [#allocation4], 0
    // Predicated region
    $region2: #{loss_fn.1} parent=1 // pred_check
      _
    $region3: #{loss_fn.1} parent=1 // pred_check_branch
      %12 = sbr.rel (0) target = $region5
    $region4: #{loss_fn.1} parent=1 // pred_region
      _
    $region5: #{loss_fn.1} parent=1 // pred_fallthru
      _
    // Predicated region
    $region6: #{loss_fn.1} parent=1 // pred_check
      _
    $region7: #{loss_fn.1} parent=1 // pred_check_branch
      %14 = sbr.rel (0) target = $region9
    $region8: #{loss_fn.1} parent=1 // pred_region
      _
    $region9: #{loss_fn.1} parent=1 // pred_fallthru
      _
    // Predicated region
    $region10: #{loss_fn.1} parent=1 // pred_check
      _
    $region11: #{loss_fn.1} parent=1 // pred_check_branch
      %16 = sbr.rel (0) target = $region13
    $region12: #{loss_fn.1} parent=1 // pred_region
      _
    $region13: #{loss_fn.1} parent=1 // pred_fallthru
      _
    // Predicated region
    $region14: #{loss_fn.1} parent=1 // pred_check
      _
    $region15: #{loss_fn.1} parent=1 // pred_check_branch
      %18 = sbr.rel (0) target = $region17
    $region16: #{loss_fn.1} parent=1 // pred_region
      _
    $region17: #{loss_fn.1} parent=1 // pred_fallthru
      _
    // Predicated region
    $region18: #{loss_fn.1} parent=1 // pred_check
      _
    $region19: #{loss_fn.1} parent=1 // pred_check_branch
      %20 = sbr.rel (0) target = $region21
    $region20: #{loss_fn.1} parent=1 // pred_region
      _
    $region21: #{loss_fn.1} parent=1 // pred_fallthru
      _
    %p21 = scmp.eq.s32.totalorder 0, 0
    // Predicated region
    $region22: #{loss_fn.1} parent=1 // pred_check
      %p22 = pneg %p21
    $region23: #{loss_fn.1} parent=1 // pred_check_branch
      %24 = sbr.rel (%p22) target = $region25
    $region24: #{loss_fn.1} parent=1 // pred_region
      %s25 = scalar_lea.smem [#allocation2], 0
      %26 = sst [smem:[%s25]] -0.25
    $region25: #{loss_fn.1} parent=1 // pred_fallthru
      _
    %v27 = vld [vmem:[%s0] sm:$0x3]
    %v28 = vld [vmem:[%s1] sm:$0x3]
    %v29 = vld [vmem:[%s2] sm:$0x3]
    %vm30 = vcmp.ne.f32.partialorder %v29, 0.0
    %v31 = vsub.f32 1.0, %v27
    %v32 = vsel %vm30, %v27, %v31
    %v33 = vlog2.pop %v32
    %v34 = vmul.f32 %v33, 0.6931472
    %v35 = vmax.f32 %v34, -100.0
    %v36 = vmul.f32 %v28, %v35
    %s37 = sld [smem:[#allocation2]]
    %vm38 = vcmask 1041408
    %v39 = vsel %vm38, %v36, 0.0
    %40 = vadd.xlane.f32.xlu0 %v39
    %v41 = vpop.xlane.xlu0 %40
    %v42 = vrot.slane %v41, 4
    %v43 = vadd.f32 %v41, %v42
    %v44 = vrot.slane %v43, 2
    %v45 = vadd.f32 %v43, %v44
    %v46 = vrot.slane %v45, 1
    %v47 = vadd.f32 %v45, %v46
    %s48 = vtos %v47
    %s49 = sadd.f32 %s37, %s48
    %s50 = scalar_lea.smem [#allocation2], 0
    %51 = sst [smem:[%s50]] %s49
    // Predicated region
    $region26: #{loss_fn.1} parent=1 // pred_check
      %p52 = pneg %p21
    $region27: #{loss_fn.1} parent=1 // pred_check_branch
      %54 = sbr.rel (%p52) target = $region29
    $region28: #{loss_fn.1} parent=1 // pred_region
      %v55 = vld [vmem:[%s3] sm:$0x1]
      %v56 = vld [vmem:[%s4] sm:$0x1]
      %v57 = vmul.f32 %v56, 2.0
      %v58 = vmul.f32 %v55, %v55
      %v59 = vsub.f32 %v57, %v58
      %v60 = vmul.f32 %v57, 1.442695
      %v61 = vpow.pop %v60
      %v62 = vsub.f32 %v59, %v61
      %s63 = sld [smem:[#allocation2]]
      %vm64 = vcmask 1040384
      %v65 = vsel %vm64, %v62, 0.0
      %66 = vadd.xlane.f32.xlu0 %v65
      %v67 = vpop.xlane.xlu0 %66
      %v68 = vrot.slane %v67, 4
      %v69 = vadd.f32 %v67, %v68
      %v70 = vrot.slane %v69, 2
      %v71 = vadd.f32 %v69, %v70
      %v72 = vrot.slane %v71, 1
      %v73 = vadd.f32 %v71, %v72
      %s74 = vtos %v73
      %s75 = smul.f32 %s74, -0.001953125
      %s76 = sadd.f32 %s63, %s75
      %s77 = scalar_lea.smem [#allocation3], 0
      %78 = sst [smem:[%s77]] %s76
    $region29: #{loss_fn.1} parent=1 // pred_fallthru
      _
    // Predicated region
    $region30: #{loss_fn.1} parent=1 // pred_check
      _
    $region31: #{loss_fn.1} parent=1 // pred_check_branch
      %80 = sbr.rel (0) target = $region33
    $region32: #{loss_fn.1} parent=1 // pred_region
      %s82 = ssub.s32 16, 16
      %83 = vsyncadd [#allocation4], %s82
      %86 = dma.smem_to_hbm [#allocation3], 16, %s5, [#allocation4]
    $region33: #{loss_fn.1} parent=1 // pred_fallthru
      _
    // Predicated region
    $region34: #{loss_fn.1} parent=1 // pred_check
      _
    $region35: #{loss_fn.1} parent=1 // pred_check_branch
      %88 = sbr.rel (0) target = $region37
    $region36: #{loss_fn.1} parent=1 // pred_region
      %89 = dma.done [#allocation4], 16
    $region37: #{loss_fn.1} parent=1 // pred_fallthru
      _
    %90 = sfence
    %91 = vsyncpa [#allocation4], 1

</llo_original>
